<compile_context>
chip_gen: v6e
topology: v6e:2x2x1
jax: 0.10.0
libtpu: 0.0.40
codegen_flags: <defaults>
</compile_context>

<pallas_src>
import numpy as np
import jax
import jax.numpy as jnp
from jax.experimental import pallas as pl
from jax.experimental.pallas import tpu as pltpu

IMAGE_SIZE = (1920, 1080)


# -----------------------------------------------------------------------------
# Pallas kernel (single invocation, no grid)
# -----------------------------------------------------------------------------
def _optimize_step_kernel(cam_ref, reg_ref, pos_ref, vis_ref, delta_ref,
                          tgt_ref, msk_ref, out3d_ref, loss_ref):
    num_cams = cam_ref.shape[0]          # static

    dX = delta_ref[pl.ds(0, 1), :]       # (1, N_pad)
    dY = delta_ref[pl.ds(1, 1), :]
    dZ = delta_ref[pl.ds(2, 1), :]
    X = pos_ref[pl.ds(0, 1), :] + dX     # refined pose = pred_3d + delta
    Y = pos_ref[pl.ds(1, 1), :] + dY
    Z = pos_ref[pl.ds(2, 1), :] + dZ

    # refined_pose3d = cat([refined_pose_pre, vis], dim=-1) (planar layout)
    out3d_ref[pl.ds(0, 1), :] = X
    out3d_ref[pl.ds(1, 1), :] = Y
    out3d_ref[pl.ds(2, 1), :] = Z
    out3d_ref[pl.ds(3, 1), :] = vis_ref[pl.ds(0, 1), :]

    # per-lane accumulator: reg_p * delta^2 + per-camera masked reproj error.
    # Padded delta lanes are zero, so the regularization sum stays exact.
    reg_p = reg_ref[0, 0]
    err_acc = reg_p * (dX * dX + dY * dY + dZ * dZ)

    # Static camera loop (C is small).  For large C, switch to a grid axis with
    # per-camera partial losses and dimension_semantics=("parallel",) (v7x).
    for c in range(num_cams):
        # camera params, flattened per camera: [K(9), R(9), t(3), distCoef(5)]
        k00 = cam_ref[c, 0]; k01 = cam_ref[c, 1]; k02 = cam_ref[c, 2]
        k10 = cam_ref[c, 3]; k11 = cam_ref[c, 4]; k12 = cam_ref[c, 5]
        r00 = cam_ref[c, 9];  r01 = cam_ref[c, 10]; r02 = cam_ref[c, 11]
        r10 = cam_ref[c, 12]; r11 = cam_ref[c, 13]; r12 = cam_ref[c, 14]
        r20 = cam_ref[c, 15]; r21 = cam_ref[c, 16]; r22 = cam_ref[c, 17]
        t0 = cam_ref[c, 18]; t1 = cam_ref[c, 19]; t2 = cam_ref[c, 20]
        d0 = cam_ref[c, 21]; d1 = cam_ref[c, 22]; d2 = cam_ref[c, 23]
        d3 = cam_ref[c, 24]; d4 = cam_ref[c, 25]

        # projectjointsPoints: pinhole projection + radial/tangential distortion.
        # TODO(synk): exact source of projectjointsPoints_torch is not provided;
        #             standard (non in-place) OpenCV-style formulation is used.
        xc = r00 * X + r01 * Y + r02 * Z + t0
        yc = r10 * X + r11 * Y + r12 * Z + t1
        zc = r20 * X + r21 * Y + r22 * Z + t2
        inv_z = pl.reciprocal(zc, approx=False)     # EUP, exact
        xp = xc * inv_z
        yp = yc * inv_z
        r2 = xp * xp + yp * yp
        radial = 1.0 + d0 * r2 + d1 * r2 * r2 + d4 * r2 * r2 * r2
        xd = xp * radial + 2.0 * d2 * xp * yp + d3 * (r2 + 2.0 * xp * xp)
        yd = yp * radial + 2.0 * d3 * xp * yp + d2 * (r2 + 2.0 * yp * yp)
        u = k00 * xd + k01 * yd + k02
        v = k10 * xd + k11 * yd + k12

        # masked squared reprojection error for this camera (where-select so
        # padded / unmatched lanes can never inject non-finite values)
        du = u - tgt_ref[pl.ds(2 * c, 1), :]
        dv = v - tgt_ref[pl.ds(2 * c + 1, 1), :]
        m = msk_ref[pl.ds(c, 1), :]
        err_acc = err_acc + jnp.where(m > 0.0, du * du + dv * dv, 0.0)

    loss_ref[...] = jnp.zeros_like(loss_ref) + jnp.sum(err_acc)


# -----------------------------------------------------------------------------
# Wrapper
# -----------------------------------------------------------------------------
def _round_up(x, m):
    return ((x + m - 1) // m) * m


def prepare_inputs(pred_bodys_3d, targets, masks, cam_params):
    """Step-invariant preprocessing into planar, lane-dense, 128-padded layout.

    pred_bodys_3d: (P, Kp, 4); targets: (C, P, Kp, 2); masks: (C, P, Kp);
    cam_params: (C, 26).
    """
    P, Kp = pred_bodys_3d.shape[0], pred_bodys_3d.shape[1]
    C = cam_params.shape[0]
    N = P * Kp
    N_pad = max(_round_up(N, 128), 128)
    pad = N_pad - N

    pos = jnp.asarray(pred_bodys_3d[:, :, :3], jnp.float32).reshape(N, 3).T  # (3,N)
    vis = jnp.asarray(pred_bodys_3d[:, :, 3], jnp.float32).reshape(1, N)     # (1,N)
    tgt = jnp.asarray(targets, jnp.float32).reshape(C, N, 2)
    tgt = jnp.transpose(tgt, (0, 2, 1)).reshape(C * 2, N)                    # (2C,N)
    msk = jnp.asarray(masks, jnp.float32).reshape(C, N)                      # (C,N)

    pos_p = jnp.pad(pos, ((0, 0), (0, pad)))
    if pad:
        pos_p = pos_p.at[2, N:].set(1.0)   # keep zc away from 0 on padded lanes
    vis_p = jnp.pad(vis, ((0, 0), (0, pad)))
    tgt_p = jnp.pad(tgt, ((0, 0), (0, pad)))
    msk_p = jnp.pad(msk, ((0, 0), (0, pad)))
    cam = jnp.asarray(cam_params, jnp.float32)

    return dict(pos=pos_p, vis=vis_p, tgt=tgt_p, msk=msk_p, cam=cam,
                P=P, Kp=Kp, N=N, N_pad=N_pad)


def optimize_step_forward(prep, delta_p, reg_p):
    """prep: output of prepare_inputs; delta_p: (P, Kp, 3); reg_p: scalar."""
    P, Kp, N, N_pad = prep["P"], prep["Kp"], prep["N"], prep["N_pad"]
    pad = N_pad - N

    delta = jnp.asarray(delta_p, jnp.float32).reshape(N, 3).T        # (3, N)
    delta = jnp.pad(delta, ((0, 0), (0, pad)))                       # (3, N_pad)
    reg = jnp.full((1, 1), reg_p, jnp.float32)                       # SMEM scalar

    out3d_planar, loss = pl.pallas_call(
        _optimize_step_kernel,
        in_specs=[
            pl.BlockSpec(memory_space=pltpu.MemorySpace.SMEM),   # cam params (C,26)
            pl.BlockSpec(memory_space=pltpu.MemorySpace.SMEM),   # reg_p (1,1)
            pl.BlockSpec(memory_space=pltpu.MemorySpace.VMEM),   # pos (3,N_pad)
            pl.BlockSpec(memory_space=pltpu.MemorySpace.VMEM),   # vis (1,N_pad)
            pl.BlockSpec(memory_space=pltpu.MemorySpace.VMEM),   # delta (3,N_pad)
            pl.BlockSpec(memory_space=pltpu.MemorySpace.VMEM),   # targets (2C,N_pad)
            pl.BlockSpec(memory_space=pltpu.MemorySpace.VMEM),   # masks (C,N_pad)
        ],
        out_specs=[
            pl.BlockSpec(memory_space=pltpu.MemorySpace.VMEM),   # refined3d
            pl.BlockSpec(memory_space=pltpu.MemorySpace.VMEM),   # loss
        ],
        out_shape=[
            jax.ShapeDtypeStruct((4, N_pad), jnp.float32),
            jax.ShapeDtypeStruct((1, 1), jnp.float32),
        ],
    )(prep["cam"], reg, prep["pos"], prep["vis"], delta,
      prep["tgt"], prep["msk"])

    refined_pose3d = out3d_planar[:, :N].reshape(4, P, Kp).transpose(1, 2, 0)
    return refined_pose3d, loss[0, 0]


# -----------------------------------------------------------------------------
# Host-side glue (NumPy): projection + the data-dependent matching of the
# module's first ("cache building") branch.
# -----------------------------------------------------------------------------
def project_points_np(X, K, R, t, dist):
    """X: (N, 3) -> (N, 2)."""
    x = R.astype(np.float64) @ X.astype(np.float64).T + t.astype(np.float64).reshape(3, 1)
    xp = x[0] / x[2]
    yp = x[1] / x[2]
    r2 = xp * xp + yp * yp
    k1, k2, p1, p2, k3 = [float(v) for v in dist]
    radial = 1.0 + k1 * r2 + k2 * r2 * r2 + k3 * r2 * r2 * r2
    xd = xp * radial + 2.0 * p1 * xp * yp + p2 * (r2 + 2.0 * xp * xp)
    yd = yp * radial + 2.0 * p2 * xp * yp + p1 * (r2 + 2.0 * yp * yp)
    u = K[0, 0] * xd + K[0, 1] * yd + K[0, 2]
    v = K[1, 0] * xd + K[1, 1] * yd + K[1, 2]
    return np.stack([u, v], axis=1)


def build_matches(pred_bodys_3d, pose_2d_collect, cam_info,
                  image_size=IMAGE_SIZE, threshold=50):
    """Reproduces the first-call matching branch; returns dense per-camera
    target (P,Kp,2) and mask (P,Kp) arrays (zeros where no match)."""
    P, Kp = pred_bodys_3d.shape[:2]
    pos = pred_bodys_3d[:, :, :3].reshape(-1, 3)
    vis3d = pred_bodys_3d[:, :, 3] > 0
    targets, masks = {}, {}
    for k, per_2d in pose_2d_collect.items():
        cam = cam_info[k]
        tgt_full = np.zeros((P, Kp, 2), np.float32)
        msk_full = np.zeros((P, Kp), np.float32)
        targets[k], masks[k] = tgt_full, msk_full
        if len(per_2d) == 0:
            continue
        proj2d = project_points_np(pos, cam['K'], cam['R'], cam['t'],
                                   cam['distCoef']).reshape(P, Kp, 2)
        x_check = (proj2d[:, :, 0] >= 0) & (proj2d[:, :, 0] <= image_size[0] - 1)
        y_check = (proj2d[:, :, 1] >= 0) & (proj2d[:, :, 1] <= image_size[1] - 1)
        check = x_check & y_check
        er_match, er_id = {}, {}
        for idx in range(P):
            match_check = check[idx] & vis3d[idx]
            if match_check.sum() < 3:
                continue
            temp_er = []
            for off_2d in per_2d:
                off_pos = off_2d[:, :2]
                off_vis = off_2d[:, 2] > 0.1
                m = match_check & off_vis
                if m.sum() == 0:
                    temp_er.append(1000.0)
                    continue
                temp_er.append(float(np.mean(
                    np.linalg.norm(off_pos[m] - proj2d[idx][m], axis=-1))))
            temp_er = np.asarray(temp_er)
            if (temp_er < threshold).sum() == 0:
                continue
            g = int(np.argmin(temp_er))
            e = float(np.min(temp_er))
            if g in er_match:
                if e < er_match[g]:
                    er_match[g], er_id[g] = e, idx
            else:
                er_match[g], er_id[g] = e, idx
        # scatter matched GT / mask to dense arrays (one GT per pred assumed)
        for g, idx in er_id.items():
            c_pose = per_2d[g]
            vis_pose = c_pose[:, 2] > 0.3
            total_mask = check[idx] & vis_pose & vis3d[idx]
            tgt_full[idx] = c_pose[:, :2]
            msk_full[idx] = total_mask.astype(np.float32)
    return targets, masks


# -----------------------------------------------------------------------------
if __name__ == "__main__":
    key = jax.random.PRNGKey(0)
    pred_num, kp_num = 2, 15
    num_cams = 2
    reg_p = 0.01
    threshold = 50

    k1, k2, k3, k4 = jax.random.split(key, 4)
    xyz = np.stack([
        np.asarray(jax.random.uniform(k1, (pred_num, kp_num), minval=-0.5, maxval=0.5)),
        np.asarray(jax.random.uniform(k2, (pred_num, kp_num), minval=-0.3, maxval=0.3)),
        np.asarray(jax.random.uniform(k3, (pred_num, kp_num), minval=3.0, maxval=5.0)),
    ], axis=-1).astype(np.float32)
    vis_col = np.ones((pred_num, kp_num, 1), np.float32)
    pred_bodys_3d = np.concatenate([xyz, vis_col], axis=-1)          # (P,Kp,4)

    # nn.Parameter(torch.rand(pred_num, kp_num, 3)) equivalent, deterministic
    delta_p = np.asarray(jax.random.uniform(k4, (pred_num, kp_num, 3),
                                            minval=0.0, maxval=1.0),
                         dtype=np.float32)

    def make_cam(R, t, dist):
        K = np.array([[1000., 0., 960.], [0., 1000., 540.], [0., 0., 1.]],
                     np.float32)
        return {'K': K, 'R': R.astype(np.float32),
                't': t.astype(np.float32).reshape(3, 1),
                'distCoef': dist.astype(np.float32)}

    th = np.deg2rad(5.0)
    R1 = np.array([[np.cos(th), 0.0, np.sin(th)],
                   [0.0, 1.0, 0.0],
                   [-np.sin(th), 0.0, np.cos(th)]])
    cam_info = {
        0: make_cam(np.eye(3), np.zeros(3),
                    np.array([-0.10, 0.05, 0.001, 0.001, 0.0])),
        1: make_cam(R1, np.array([0.10, 0.05, 0.20]),
                    np.array([-0.05, 0.01, 0.0, 0.0, 0.0])),
    }

    # Ground-truth 2D detections: projected true 3D + small pixel noise
    rng = np.random.RandomState(0)
    pose_2d_collect = {}
    for ck, cam in cam_info.items():
        gt_list = []
        for p in range(pred_num):
            proj = project_points_np(xyz[p], cam['K'], cam['R'], cam['t'],
                                     cam['distCoef'])
            noise = rng.normal(0.0, 2.0, size=proj.shape)
            conf = np.ones((kp_num, 1), np.float32)
            gt_list.append(np.concatenate([proj + noise, conf],
                                          axis=-1).astype(np.float32))
        pose_2d_collect[ck] = gt_list

    # Host-side matching (first-call branch of the PyTorch module)
    targets_d, masks_d = build_matches(pred_bodys_3d, pose_2d_collect, cam_info,
                                       image_size=IMAGE_SIZE, threshold=threshold)
    cam_keys = sorted(cam_info.keys())
    targets = np.stack([targets_d[k] for k in cam_keys], axis=0)     # (C,P,Kp,2)
    masks = np.stack([masks_d[k] for k in cam_keys], axis=0)         # (C,P,Kp)
    cam_params = np.stack([
        np.concatenate([cam_info[k]['K'].reshape(-1),
                        cam_info[k]['R'].reshape(-1),
                        cam_info[k]['t'].reshape(-1),
                        cam_info[k]['distCoef'].reshape(-1)])
        for k in cam_keys], axis=0).astype(np.float32)               # (C,26)

    # Step-invariant preprocessing done once; only delta_p changes per step.
    prep = prepare_inputs(jnp.asarray(pred_bodys_3d), jnp.asarray(targets),
                          jnp.asarray(masks), jnp.asarray(cam_params))

    refined3d, loss = optimize_step_forward(prep, jnp.asarray(delta_p), reg_p)
    refined3d, loss = jax.block_until_ready((refined3d, loss))

    # ---- float64 NumPy reference for the hot path ----
    refined_np = xyz.astype(np.float64) + delta_p.astype(np.float64)
    ref_loss = reg_p * np.sum(delta_p.astype(np.float64) ** 2)
    for ci, k in enumerate(cam_keys):
        cam = cam_info[k]
        proj = project_points_np(refined_np.reshape(-1, 3), cam['K'], cam['R'],
                                 cam['t'], cam['distCoef']
                                 ).reshape(pred_num, kp_num, 2)
        diff = proj - targets[ci]
        ref_loss += np.sum((diff ** 2).sum(-1) * masks[ci])
    ref_refined = np.concatenate([refined_np, vis_col.astype(np.float64)],
                                 axis=-1)

    assert np.allclose(np.asarray(refined3d), ref_refined,
                       rtol=1e-5, atol=1e-4), "refined pose mismatch"
    assert np.allclose(float(loss), float(ref_loss),
                       rtol=2e-3, atol=1e-2), (float(loss), float(ref_loss))
    print("KERNEL_OK")
</pallas_src>

<mosaic_0001>
module attributes {stable_mosaic.version = 11 : i64} {
  func.func @_optimize_step_kernel(%arg0: memref<2x26xf32, #tpu.memory_space<smem>>, %arg1: memref<1x1xf32, #tpu.memory_space<smem>>, %arg2: memref<3x128xf32, #tpu.memory_space<vmem>>, %arg3: memref<1x128xf32, #tpu.memory_space<vmem>>, %arg4: memref<3x128xf32, #tpu.memory_space<vmem>>, %arg5: memref<4x128xf32, #tpu.memory_space<vmem>>, %arg6: memref<2x128xf32, #tpu.memory_space<vmem>>, %arg7: memref<4x128xf32, #tpu.memory_space<vmem>>, %arg8: memref<1x1xf32, #tpu.memory_space<vmem>>) attributes {dimension_semantics = [], scalar_prefetch = 0 : i64, scratch_operands = 0 : i64, tpu.core_type = #tpu.core_type<tc>} {
    %c0 = arith.constant 0 : index
    %c0_0 = arith.constant 0 : index
    %0 = vector.load %arg4[%c0, %c0_0] : memref<3x128xf32, #tpu.memory_space<vmem>>, vector<1x128xf32>
    %c1 = arith.constant 1 : index
    %c0_1 = arith.constant 0 : index
    %1 = vector.load %arg4[%c1, %c0_1] : memref<3x128xf32, #tpu.memory_space<vmem>>, vector<1x128xf32>
    %c2 = arith.constant 2 : index
    %c0_2 = arith.constant 0 : index
    %2 = vector.load %arg4[%c2, %c0_2] : memref<3x128xf32, #tpu.memory_space<vmem>>, vector<1x128xf32>
    %c0_3 = arith.constant 0 : index
    %c0_4 = arith.constant 0 : index
    %3 = vector.load %arg2[%c0_3, %c0_4] : memref<3x128xf32, #tpu.memory_space<vmem>>, vector<1x128xf32>
    %4 = arith.addf %3, %0 : vector<1x128xf32>
    %c1_5 = arith.constant 1 : index
    %c0_6 = arith.constant 0 : index
    %5 = vector.load %arg2[%c1_5, %c0_6] : memref<3x128xf32, #tpu.memory_space<vmem>>, vector<1x128xf32>
    %6 = arith.addf %5, %1 : vector<1x128xf32>
    %c2_7 = arith.constant 2 : index
    %c0_8 = arith.constant 0 : index
    %7 = vector.load %arg2[%c2_7, %c0_8] : memref<3x128xf32, #tpu.memory_space<vmem>>, vector<1x128xf32>
    %8 = arith.addf %7, %2 : vector<1x128xf32>
    %c0_9 = arith.constant 0 : index
    %c0_10 = arith.constant 0 : index
    %9 = vector.load %arg7[%c0_9, %c0_10] : memref<4x128xf32, #tpu.memory_space<vmem>>, vector<1x128xf32>
    tpu.vector_store %arg7[%c0_9, %c0_10], %4 {strides = array<i32>} : memref<4x128xf32, #tpu.memory_space<vmem>>, vector<1x128xf32>,
    %c1_11 = arith.constant 1 : index
    %c0_12 = arith.constant 0 : index
    %10 = vector.load %arg7[%c1_11, %c0_12] : memref<4x128xf32, #tpu.memory_space<vmem>>, vector<1x128xf32>
    tpu.vector_store %arg7[%c1_11, %c0_12], %6 {strides = array<i32>} : memref<4x128xf32, #tpu.memory_space<vmem>>, vector<1x128xf32>,
    %c2_13 = arith.constant 2 : index
    %c0_14 = arith.constant 0 : index
    %11 = vector.load %arg7[%c2_13, %c0_14] : memref<4x128xf32, #tpu.memory_space<vmem>>, vector<1x128xf32>
    tpu.vector_store %arg7[%c2_13, %c0_14], %8 {strides = array<i32>} : memref<4x128xf32, #tpu.memory_space<vmem>>, vector<1x128xf32>,
    %c0_15 = arith.constant 0 : index
    %c0_16 = arith.constant 0 : index
    %12 = vector.load %arg3[%c0_15, %c0_16] : memref<1x128xf32, #tpu.memory_space<vmem>>, vector<1x128xf32>
    %c3 = arith.constant 3 : index
    %c0_17 = arith.constant 0 : index
    %13 = vector.load %arg7[%c3, %c0_17] : memref<4x128xf32, #tpu.memory_space<vmem>>, vector<1x128xf32>
    tpu.vector_store %arg7[%c3, %c0_17], %12 {strides = array<i32>} : memref<4x128xf32, #tpu.memory_space<vmem>>, vector<1x128xf32>,
    %c0_18 = arith.constant 0 : index
    %c0_19 = arith.constant 0 : index
    %14 = memref.load %arg1[%c0_18, %c0_19] : memref<1x1xf32, #tpu.memory_space<smem>>
    %15 = arith.mulf %0, %0 : vector<1x128xf32>
    %16 = arith.mulf %1, %1 : vector<1x128xf32>
    %17 = arith.addf %15, %16 : vector<1x128xf32>
    %18 = arith.mulf %2, %2 : vector<1x128xf32>
    %19 = arith.addf %17, %18 : vector<1x128xf32>
    %20 = vector.broadcast %14 : f32 to vector<1x128xf32>
    %21 = arith.mulf %20, %19 : vector<1x128xf32>
    %c0_20 = arith.constant 0 : index
    %c0_21 = arith.constant 0 : index
    %22 = memref.load %arg0[%c0_20, %c0_21] : memref<2x26xf32, #tpu.memory_space<smem>>
    %c0_22 = arith.constant 0 : index
    %c1_23 = arith.constant 1 : index
    %23 = memref.load %arg0[%c0_22, %c1_23] : memref<2x26xf32, #tpu.memory_space<smem>>
    %c0_24 = arith.constant 0 : index
    %c2_25 = arith.constant 2 : index
    %24 = memref.load %arg0[%c0_24, %c2_25] : memref<2x26xf32, #tpu.memory_space<smem>>
    %c0_26 = arith.constant 0 : index
    %c3_27 = arith.constant 3 : index
    %25 = memref.load %arg0[%c0_26, %c3_27] : memref<2x26xf32, #tpu.memory_space<smem>>
    %c0_28 = arith.constant 0 : index
    %c4 = arith.constant 4 : index
    %26 = memref.load %arg0[%c0_28, %c4] : memref<2x26xf32, #tpu.memory_space<smem>>
    %c0_29 = arith.constant 0 : index
    %c5 = arith.constant 5 : index
    %27 = memref.load %arg0[%c0_29, %c5] : memref<2x26xf32, #tpu.memory_space<smem>>
    %c0_30 = arith.constant 0 : index
    %c9 = arith.constant 9 : index
    %28 = memref.load %arg0[%c0_30, %c9] : memref<2x26xf32, #tpu.memory_space<smem>>
    %c0_31 = arith.constant 0 : index
    %c10 = arith.constant 10 : index
    %29 = memref.load %arg0[%c0_31, %c10] : memref<2x26xf32, #tpu.memory_space<smem>>
    %c0_32 = arith.constant 0 : index
    %c11 = arith.constant 11 : index
    %30 = memref.load %arg0[%c0_32, %c11] : memref<2x26xf32, #tpu.memory_space<smem>>
    %c0_33 = arith.constant 0 : index
    %c12 = arith.constant 12 : index
    %31 = memref.load %arg0[%c0_33, %c12] : memref<2x26xf32, #tpu.memory_space<smem>>
    %c0_34 = arith.constant 0 : index
    %c13 = arith.constant 13 : index
    %32 = memref.load %arg0[%c0_34, %c13] : memref<2x26xf32, #tpu.memory_space<smem>>
    %c0_35 = arith.constant 0 : index
    %c14 = arith.constant 14 : index
    %33 = memref.load %arg0[%c0_35, %c14] : memref<2x26xf32, #tpu.memory_space<smem>>
    %c0_36 = arith.constant 0 : index
    %c15 = arith.constant 15 : index
    %34 = memref.load %arg0[%c0_36, %c15] : memref<2x26xf32, #tpu.memory_space<smem>>
    %c0_37 = arith.constant 0 : index
    %c16 = arith.constant 16 : index
    %35 = memref.load %arg0[%c0_37, %c16] : memref<2x26xf32, #tpu.memory_space<smem>>
    %c0_38 = arith.constant 0 : index
    %c17 = arith.constant 17 : index
    %36 = memref.load %arg0[%c0_38, %c17] : memref<2x26xf32, #tpu.memory_space<smem>>
    %c0_39 = arith.constant 0 : index
    %c18 = arith.constant 18 : index
    %37 = memref.load %arg0[%c0_39, %c18] : memref<2x26xf32, #tpu.memory_space<smem>>
    %c0_40 = arith.constant 0 : index
    %c19 = arith.constant 19 : index
    %38 = memref.load %arg0[%c0_40, %c19] : memref<2x26xf32, #tpu.memory_space<smem>>
    %c0_41 = arith.constant 0 : index
    %c20 = arith.constant 20 : index
    %39 = memref.load %arg0[%c0_41, %c20] : memref<2x26xf32, #tpu.memory_space<smem>>
    %c0_42 = arith.constant 0 : index
    %c21 = arith.constant 21 : index
    %40 = memref.load %arg0[%c0_42, %c21] : memref<2x26xf32, #tpu.memory_space<smem>>
    %c0_43 = arith.constant 0 : index
    %c22 = arith.constant 22 : index
    %41 = memref.load %arg0[%c0_43, %c22] : memref<2x26xf32, #tpu.memory_space<smem>>
    %c0_44 = arith.constant 0 : index
    %c23 = arith.constant 23 : index
    %42 = memref.load %arg0[%c0_44, %c23] : memref<2x26xf32, #tpu.memory_space<smem>>
    %c0_45 = arith.constant 0 : index
    %c24 = arith.constant 24 : index
    %43 = memref.load %arg0[%c0_45, %c24] : memref<2x26xf32, #tpu.memory_space<smem>>
    %c0_46 = arith.constant 0 : index
    %c25 = arith.constant 25 : index
    %44 = memref.load %arg0[%c0_46, %c25] : memref<2x26xf32, #tpu.memory_space<smem>>
    %45 = vector.broadcast %28 : f32 to vector<1x128xf32>
    %46 = arith.mulf %45, %4 : vector<1x128xf32>
    %47 = vector.broadcast %29 : f32 to vector<1x128xf32>
    %48 = arith.mulf %47, %6 : vector<1x128xf32>
    %49 = arith.addf %46, %48 : vector<1x128xf32>
    %50 = vector.broadcast %30 : f32 to vector<1x128xf32>
    %51 = arith.mulf %50, %8 : vector<1x128xf32>
    %52 = arith.addf %49, %51 : vector<1x128xf32>
    %53 = vector.broadcast %37 : f32 to vector<1x128xf32>
    %54 = arith.addf %52, %53 : vector<1x128xf32>
    %55 = vector.broadcast %31 : f32 to vector<1x128xf32>
    %56 = arith.mulf %55, %4 : vector<1x128xf32>
    %57 = vector.broadcast %32 : f32 to vector<1x128xf32>
    %58 = arith.mulf %57, %6 : vector<1x128xf32>
    %59 = arith.addf %56, %58 : vector<1x128xf32>
    %60 = vector.broadcast %33 : f32 to vector<1x128xf32>
    %61 = arith.mulf %60, %8 : vector<1x128xf32>
    %62 = arith.addf %59, %61 : vector<1x128xf32>
    %63 = vector.broadcast %38 : f32 to vector<1x128xf32>
    %64 = arith.addf %62, %63 : vector<1x128xf32>
    %65 = vector.broadcast %34 : f32 to vector<1x128xf32>
    %66 = arith.mulf %65, %4 : vector<1x128xf32>
    %67 = vector.broadcast %35 : f32 to vector<1x128xf32>
    %68 = arith.mulf %67, %6 : vector<1x128xf32>
    %69 = arith.addf %66, %68 : vector<1x128xf32>
    %70 = vector.broadcast %36 : f32 to vector<1x128xf32>
    %71 = arith.mulf %70, %8 : vector<1x128xf32>
    %72 = arith.addf %69, %71 : vector<1x128xf32>
    %73 = vector.broadcast %39 : f32 to vector<1x128xf32>
    %74 = arith.addf %72, %73 : vector<1x128xf32>
    %75 = tpu.reciprocal %74 : vector<1x128xf32> -> vector<1x128xf32>
    %76 = arith.mulf %54, %75 : vector<1x128xf32>
    %77 = arith.mulf %64, %75 : vector<1x128xf32>
    %78 = arith.mulf %76, %76 : vector<1x128xf32>
    %79 = arith.mulf %77, %77 : vector<1x128xf32>
    %80 = arith.addf %78, %79 : vector<1x128xf32>
    %81 = vector.broadcast %40 : f32 to vector<1x128xf32>
    %82 = arith.mulf %81, %80 : vector<1x128xf32>
    %cst = arith.constant 1.000000e+00 : f32
    %83 = vector.broadcast %cst : f32 to vector<1x128xf32>
    %84 = arith.addf %83, %82 : vector<1x128xf32>
    %85 = vector.broadcast %41 : f32 to vector<1x128xf32>
    %86 = arith.mulf %85, %80 : vector<1x128xf32>
    %87 = arith.mulf %86, %80 : vector<1x128xf32>
    %88 = arith.addf %84, %87 : vector<1x128xf32>
    %89 = vector.broadcast %44 : f32 to vector<1x128xf32>
    %90 = arith.mulf %89, %80 : vector<1x128xf32>
    %91 = arith.mulf %90, %80 : vector<1x128xf32>
    %92 = arith.mulf %91, %80 : vector<1x128xf32>
    %93 = arith.addf %88, %92 : vector<1x128xf32>
    %94 = arith.mulf %76, %93 : vector<1x128xf32>
    %cst_47 = arith.constant 2.000000e+00 : f32
    %95 = arith.mulf %cst_47, %42 : f32
    %96 = vector.broadcast %95 : f32 to vector<1x128xf32>
    %97 = arith.mulf %96, %76 : vector<1x128xf32>
    %98 = arith.mulf %97, %77 : vector<1x128xf32>
    %99 = arith.addf %94, %98 : vector<1x128xf32>
    %cst_48 = arith.constant 2.000000e+00 : f32
    %100 = vector.broadcast %cst_48 : f32 to vector<1x128xf32>
    %101 = arith.mulf %100, %76 : vector<1x128xf32>
    %102 = arith.mulf %101, %76 : vector<1x128xf32>
    %103 = arith.addf %80, %102 : vector<1x128xf32>
    %104 = vector.broadcast %43 : f32 to vector<1x128xf32>
    %105 = arith.mulf %104, %103 : vector<1x128xf32>
    %106 = arith.addf %99, %105 : vector<1x128xf32>
    %107 = arith.mulf %77, %93 : vector<1x128xf32>
    %cst_49 = arith.constant 2.000000e+00 : f32
    %108 = arith.mulf %cst_49, %43 : f32
    %109 = vector.broadcast %108 : f32 to vector<1x128xf32>
    %110 = arith.mulf %109, %76 : vector<1x128xf32>
    %111 = arith.mulf %110, %77 : vector<1x128xf32>
    %112 = arith.addf %107, %111 : vector<1x128xf32>
    %cst_50 = arith.constant 2.000000e+00 : f32
    %113 = vector.broadcast %cst_50 : f32 to vector<1x128xf32>
    %114 = arith.mulf %113, %77 : vector<1x128xf32>
    %115 = arith.mulf %114, %77 : vector<1x128xf32>
    %116 = arith.addf %80, %115 : vector<1x128xf32>
    %117 = vector.broadcast %42 : f32 to vector<1x128xf32>
    %118 = arith.mulf %117, %116 : vector<1x128xf32>
    %119 = arith.addf %112, %118 : vector<1x128xf32>
    %120 = vector.broadcast %22 : f32 to vector<1x128xf32>
    %121 = arith.mulf %120, %106 : vector<1x128xf32>
    %122 = vector.broadcast %23 : f32 to vector<1x128xf32>
    %123 = arith.mulf %122, %119 : vector<1x128xf32>
    %124 = arith.addf %121, %123 : vector<1x128xf32>
    %125 = vector.broadcast %24 : f32 to vector<1x128xf32>
    %126 = arith.addf %124, %125 : vector<1x128xf32>
    %127 = vector.broadcast %25 : f32 to vector<1x128xf32>
    %128 = arith.mulf %127, %106 : vector<1x128xf32>
    %129 = vector.broadcast %26 : f32 to vector<1x128xf32>
    %130 = arith.mulf %129, %119 : vector<1x128xf32>
    %131 = arith.addf %128, %130 : vector<1x128xf32>
    %132 = vector.broadcast %27 : f32 to vector<1x128xf32>
    %133 = arith.addf %131, %132 : vector<1x128xf32>
    %c0_51 = arith.constant 0 : index
    %c0_52 = arith.constant 0 : index
    %134 = vector.load %arg5[%c0_51, %c0_52] : memref<4x128xf32, #tpu.memory_space<vmem>>, vector<1x128xf32>
    %135 = arith.subf %126, %134 : vector<1x128xf32>
    %c1_53 = arith.constant 1 : index
    %c0_54 = arith.constant 0 : index
    %136 = vector.load %arg5[%c1_53, %c0_54] : memref<4x128xf32, #tpu.memory_space<vmem>>, vector<1x128xf32>
    %137 = arith.subf %133, %136 : vector<1x128xf32>
    %c0_55 = arith.constant 0 : index
    %c0_56 = arith.constant 0 : index
    %138 = vector.load %arg6[%c0_55, %c0_56] : memref<2x128xf32, #tpu.memory_space<vmem>>, vector<1x128xf32>
    %cst_57 = arith.constant 0.000000e+00 : f32
    %139 = vector.broadcast %cst_57 : f32 to vector<1x128xf32>
    %140 = arith.cmpf ogt, %138, %139 : vector<1x128xf32>
    %141 = arith.mulf %135, %135 : vector<1x128xf32>
    %142 = arith.mulf %137, %137 : vector<1x128xf32>
    %143 = arith.addf %141, %142 : vector<1x128xf32>
    %cst_58 = arith.constant 0.000000e+00 : f32
    %144 = vector.broadcast %cst_58 : f32 to vector<1x128xf32>
    %145 = arith.select %140, %143, %144 : vector<1x128xi1>, vector<1x128xf32>
    %146 = arith.addf %21, %145 : vector<1x128xf32>
    %c1_59 = arith.constant 1 : index
    %c0_60 = arith.constant 0 : index
    %147 = memref.load %arg0[%c1_59, %c0_60] : memref<2x26xf32, #tpu.memory_space<smem>>
    %c1_61 = arith.constant 1 : index
    %c1_62 = arith.constant 1 : index
    %148 = memref.load %arg0[%c1_61, %c1_62] : memref<2x26xf32, #tpu.memory_space<smem>>
    %c1_63 = arith.constant 1 : index
    %c2_64 = arith.constant 2 : index
    %149 = memref.load %arg0[%c1_63, %c2_64] : memref<2x26xf32, #tpu.memory_space<smem>>
    %c1_65 = arith.constant 1 : index
    %c3_66 = arith.constant 3 : index
    %150 = memref.load %arg0[%c1_65, %c3_66] : memref<2x26xf32, #tpu.memory_space<smem>>
    %c1_67 = arith.constant 1 : index
    %c4_68 = arith.constant 4 : index
    %151 = memref.load %arg0[%c1_67, %c4_68] : memref<2x26xf32, #tpu.memory_space<smem>>
    %c1_69 = arith.constant 1 : index
    %c5_70 = arith.constant 5 : index
    %152 = memref.load %arg0[%c1_69, %c5_70] : memref<2x26xf32, #tpu.memory_space<smem>>
    %c1_71 = arith.constant 1 : index
    %c9_72 = arith.constant 9 : index
    %153 = memref.load %arg0[%c1_71, %c9_72] : memref<2x26xf32, #tpu.memory_space<smem>>
    %c1_73 = arith.constant 1 : index
    %c10_74 = arith.constant 10 : index
    %154 = memref.load %arg0[%c1_73, %c10_74] : memref<2x26xf32, #tpu.memory_space<smem>>
    %c1_75 = arith.constant 1 : index
    %c11_76 = arith.constant 11 : index
    %155 = memref.load %arg0[%c1_75, %c11_76] : memref<2x26xf32, #tpu.memory_space<smem>>
    %c1_77 = arith.constant 1 : index
    %c12_78 = arith.constant 12 : index
    %156 = memref.load %arg0[%c1_77, %c12_78] : memref<2x26xf32, #tpu.memory_space<smem>>
    %c1_79 = arith.constant 1 : index
    %c13_80 = arith.constant 13 : index
    %157 = memref.load %arg0[%c1_79, %c13_80] : memref<2x26xf32, #tpu.memory_space<smem>>
    %c1_81 = arith.constant 1 : index
    %c14_82 = arith.constant 14 : index
    %158 = memref.load %arg0[%c1_81, %c14_82] : memref<2x26xf32, #tpu.memory_space<smem>>
    %c1_83 = arith.constant 1 : index
    %c15_84 = arith.constant 15 : index
    %159 = memref.load %arg0[%c1_83, %c15_84] : memref<2x26xf32, #tpu.memory_space<smem>>
    %c1_85 = arith.constant 1 : index
    %c16_86 = arith.constant 16 : index
    %160 = memref.load %arg0[%c1_85, %c16_86] : memref<2x26xf32, #tpu.memory_space<smem>>
    %c1_87 = arith.constant 1 : index
    %c17_88 = arith.constant 17 : index
    %161 = memref.load %arg0[%c1_87, %c17_88] : memref<2x26xf32, #tpu.memory_space<smem>>
    %c1_89 = arith.constant 1 : index
    %c18_90 = arith.constant 18 : index
    %162 = memref.load %arg0[%c1_89, %c18_90] : memref<2x26xf32, #tpu.memory_space<smem>>
    %c1_91 = arith.constant 1 : index
    %c19_92 = arith.constant 19 : index
    %163 = memref.load %arg0[%c1_91, %c19_92] : memref<2x26xf32, #tpu.memory_space<smem>>
    %c1_93 = arith.constant 1 : index
    %c20_94 = arith.constant 20 : index
    %164 = memref.load %arg0[%c1_93, %c20_94] : memref<2x26xf32, #tpu.memory_space<smem>>
    %c1_95 = arith.constant 1 : index
    %c21_96 = arith.constant 21 : index
    %165 = memref.load %arg0[%c1_95, %c21_96] : memref<2x26xf32, #tpu.memory_space<smem>>
    %c1_97 = arith.constant 1 : index
    %c22_98 = arith.constant 22 : index
    %166 = memref.load %arg0[%c1_97, %c22_98] : memref<2x26xf32, #tpu.memory_space<smem>>
    %c1_99 = arith.constant 1 : index
    %c23_100 = arith.constant 23 : index
    %167 = memref.load %arg0[%c1_99, %c23_100] : memref<2x26xf32, #tpu.memory_space<smem>>
    %c1_101 = arith.constant 1 : index
    %c24_102 = arith.constant 24 : index
    %168 = memref.load %arg0[%c1_101, %c24_102] : memref<2x26xf32, #tpu.memory_space<smem>>
    %c1_103 = arith.constant 1 : index
    %c25_104 = arith.constant 25 : index
    %169 = memref.load %arg0[%c1_103, %c25_104] : memref<2x26xf32, #tpu.memory_space<smem>>
    %170 = vector.broadcast %153 : f32 to vector<1x128xf32>
    %171 = arith.mulf %170, %4 : vector<1x128xf32>
    %172 = vector.broadcast %154 : f32 to vector<1x128xf32>
    %173 = arith.mulf %172, %6 : vector<1x128xf32>
    %174 = arith.addf %171, %173 : vector<1x128xf32>
    %175 = vector.broadcast %155 : f32 to vector<1x128xf32>
    %176 = arith.mulf %175, %8 : vector<1x128xf32>
    %177 = arith.addf %174, %176 : vector<1x128xf32>
    %178 = vector.broadcast %162 : f32 to vector<1x128xf32>
    %179 = arith.addf %177, %178 : vector<1x128xf32>
    %180 = vector.broadcast %156 : f32 to vector<1x128xf32>
    %181 = arith.mulf %180, %4 : vector<1x128xf32>
    %182 = vector.broadcast %157 : f32 to vector<1x128xf32>
    %183 = arith.mulf %182, %6 : vector<1x128xf32>
    %184 = arith.addf %181, %183 : vector<1x128xf32>
    %185 = vector.broadcast %158 : f32 to vector<1x128xf32>
    %186 = arith.mulf %185, %8 : vector<1x128xf32>
    %187 = arith.addf %184, %186 : vector<1x128xf32>
    %188 = vector.broadcast %163 : f32 to vector<1x128xf32>
    %189 = arith.addf %187, %188 : vector<1x128xf32>
    %190 = vector.broadcast %159 : f32 to vector<1x128xf32>
    %191 = arith.mulf %190, %4 : vector<1x128xf32>
    %192 = vector.broadcast %160 : f32 to vector<1x128xf32>
    %193 = arith.mulf %192, %6 : vector<1x128xf32>
    %194 = arith.addf %191, %193 : vector<1x128xf32>
    %195 = vector.broadcast %161 : f32 to vector<1x128xf32>
    %196 = arith.mulf %195, %8 : vector<1x128xf32>
    %197 = arith.addf %194, %196 : vector<1x128xf32>
    %198 = vector.broadcast %164 : f32 to vector<1x128xf32>
    %199 = arith.addf %197, %198 : vector<1x128xf32>
    %200 = tpu.reciprocal %199 : vector<1x128xf32> -> vector<1x128xf32>
    %201 = arith.mulf %179, %200 : vector<1x128xf32>
    %202 = arith.mulf %189, %200 : vector<1x128xf32>
    %203 = arith.mulf %201, %201 : vector<1x128xf32>
    %204 = arith.mulf %202, %202 : vector<1x128xf32>
    %205 = arith.addf %203, %204 : vector<1x128xf32>
    %206 = vector.broadcast %165 : f32 to vector<1x128xf32>
    %207 = arith.mulf %206, %205 : vector<1x128xf32>
    %cst_105 = arith.constant 1.000000e+00 : f32
    %208 = vector.broadcast %cst_105 : f32 to vector<1x128xf32>
    %209 = arith.addf %208, %207 : vector<1x128xf32>
    %210 = vector.broadcast %166 : f32 to vector<1x128xf32>
    %211 = arith.mulf %210, %205 : vector<1x128xf32>
    %212 = arith.mulf %211, %205 : vector<1x128xf32>
    %213 = arith.addf %209, %212 : vector<1x128xf32>
    %214 = vector.broadcast %169 : f32 to vector<1x128xf32>
    %215 = arith.mulf %214, %205 : vector<1x128xf32>
    %216 = arith.mulf %215, %205 : vector<1x128xf32>
    %217 = arith.mulf %216, %205 : vector<1x128xf32>
    %218 = arith.addf %213, %217 : vector<1x128xf32>
    %219 = arith.mulf %201, %218 : vector<1x128xf32>
    %cst_106 = arith.constant 2.000000e+00 : f32
    %220 = arith.mulf %cst_106, %167 : f32
    %221 = vector.broadcast %220 : f32 to vector<1x128xf32>
    %222 = arith.mulf %221, %201 : vector<1x128xf32>
    %223 = arith.mulf %222, %202 : vector<1x128xf32>
    %224 = arith.addf %219, %223 : vector<1x128xf32>
    %cst_107 = arith.constant 2.000000e+00 : f32
    %225 = vector.broadcast %cst_107 : f32 to vector<1x128xf32>
    %226 = arith.mulf %225, %201 : vector<1x128xf32>
    %227 = arith.mulf %226, %201 : vector<1x128xf32>
    %228 = arith.addf %205, %227 : vector<1x128xf32>
    %229 = vector.broadcast %168 : f32 to vector<1x128xf32>
    %230 = arith.mulf %229, %228 : vector<1x128xf32>
    %231 = arith.addf %224, %230 : vector<1x128xf32>
    %232 = arith.mulf %202, %218 : vector<1x128xf32>
    %cst_108 = arith.constant 2.000000e+00 : f32
    %233 = arith.mulf %cst_108, %168 : f32
    %234 = vector.broadcast %233 : f32 to vector<1x128xf32>
    %235 = arith.mulf %234, %201 : vector<1x128xf32>
    %236 = arith.mulf %235, %202 : vector<1x128xf32>
    %237 = arith.addf %232, %236 : vector<1x128xf32>
    %cst_109 = arith.constant 2.000000e+00 : f32
    %238 = vector.broadcast %cst_109 : f32 to vector<1x128xf32>
    %239 = arith.mulf %238, %202 : vector<1x128xf32>
    %240 = arith.mulf %239, %202 : vector<1x128xf32>
    %241 = arith.addf %205, %240 : vector<1x128xf32>
    %242 = vector.broadcast %167 : f32 to vector<1x128xf32>
    %243 = arith.mulf %242, %241 : vector<1x128xf32>
    %244 = arith.addf %237, %243 : vector<1x128xf32>
    %245 = vector.broadcast %147 : f32 to vector<1x128xf32>
    %246 = arith.mulf %245, %231 : vector<1x128xf32>
    %247 = vector.broadcast %148 : f32 to vector<1x128xf32>
    %248 = arith.mulf %247, %244 : vector<1x128xf32>
    %249 = arith.addf %246, %248 : vector<1x128xf32>
    %250 = vector.broadcast %149 : f32 to vector<1x128xf32>
    %251 = arith.addf %249, %250 : vector<1x128xf32>
    %252 = vector.broadcast %150 : f32 to vector<1x128xf32>
    %253 = arith.mulf %252, %231 : vector<1x128xf32>
    %254 = vector.broadcast %151 : f32 to vector<1x128xf32>
    %255 = arith.mulf %254, %244 : vector<1x128xf32>
    %256 = arith.addf %253, %255 : vector<1x128xf32>
    %257 = vector.broadcast %152 : f32 to vector<1x128xf32>
    %258 = arith.addf %256, %257 : vector<1x128xf32>
    %c2_110 = arith.constant 2 : index
    %c0_111 = arith.constant 0 : index
    %259 = vector.load %arg5[%c2_110, %c0_111] : memref<4x128xf32, #tpu.memory_space<vmem>>, vector<1x128xf32>
    %260 = arith.subf %251, %259 : vector<1x128xf32>
    %c3_112 = arith.constant 3 : index
    %c0_113 = arith.constant 0 : index
    %261 = vector.load %arg5[%c3_112, %c0_113] : memref<4x128xf32, #tpu.memory_space<vmem>>, vector<1x128xf32>
    %262 = arith.subf %258, %261 : vector<1x128xf32>
    %c1_114 = arith.constant 1 : index
    %c0_115 = arith.constant 0 : index
    %263 = vector.load %arg6[%c1_114, %c0_115] : memref<2x128xf32, #tpu.memory_space<vmem>>, vector<1x128xf32>
    %cst_116 = arith.constant 0.000000e+00 : f32
    %264 = vector.broadcast %cst_116 : f32 to vector<1x128xf32>
    %265 = arith.cmpf ogt, %263, %264 : vector<1x128xf32>
    %266 = arith.mulf %260, %260 : vector<1x128xf32>
    %267 = arith.mulf %262, %262 : vector<1x128xf32>
    %268 = arith.addf %266, %267 : vector<1x128xf32>
    %cst_117 = arith.constant 0.000000e+00 : f32
    %269 = vector.broadcast %cst_117 : f32 to vector<1x128xf32>
    %270 = arith.select %265, %268, %269 : vector<1x128xi1>, vector<1x128xf32>
    %271 = arith.addf %146, %270 : vector<1x128xf32>
    %cst_118 = arith.constant 0.000000e+00 : f32
    %272 = vector.broadcast %cst_118 : f32 to vector<1x1xf32>
    %273 = vector.shape_cast %271 : vector<1x128xf32> to vector<1x1x128xf32>
    %cst_119 = arith.constant dense<0.000000e+00> : vector<1xf32>
    %274 = vector.multi_reduction <add>, %273, %cst_119 [1, 2] : vector<1x1x128xf32> to vector<1xf32>
    %275 = vector.shape_cast %274 : vector<1xf32> to vector<1x1x1xf32>
    %276 = vector.extract %275[0, 0, 0] : f32 from vector<1x1x1xf32>
    %277 = vector.broadcast %276 : f32 to vector<1x1xf32>
    %278 = arith.addf %272, %277 : vector<1x1xf32>
    %c0_120 = arith.constant 0 : index
    %c0_121 = arith.constant 0 : index
    %279 = vector.load %arg8[%c0_120, %c0_121] : memref<1x1xf32, #tpu.memory_space<vmem>>, vector<1x1xf32>
    tpu.vector_store %arg8[%c0_120, %c0_121], %278 {strides = array<i32>} : memref<1x1xf32, #tpu.memory_space<vmem>>, vector<1x1xf32>,
    return
  }
}

</mosaic_0001>

<llo_original>
// kernel: tpu_custom_call.1
$region0: #{tpu_custom_call.1}
  #allocation0 [shape = 'u32[]', space=smem, size = 0x4, offset = 0x4, fixed_abs, tag = 'smem constant byte address 0x4 - core index']
  #allocation1 [shape = 'u32[144,128]{1,0:T(1,128)}', space=vmem, size = 0x12000, scoped, tag = 'internal scratch']
  #allocation2 [shape = 'f32[1,1]{1,0:T(1,128)S(6)}', space=smem, size = 0x200, scoped, tag = 'scoped memory for tpu_custom_call.1']
  %s0 = inlined_call_operand.hbm [shape: f32[2,26], index: 0, kind: input, shape index: {}]
  %s1 = inlined_call_operand.<no memory space> [shape: f32[1,1], index: 1, kind: input, shape index: {}]
  %s2 = inlined_call_operand.hbm [shape: f32[3,128], index: 2, kind: input, shape index: {}]
  %s3 = inlined_call_operand.vmem [shape: f32[1,128], index: 3, kind: input, shape index: {}]
  %s4 = inlined_call_operand.vmem [shape: f32[3,128], index: 4, kind: input, shape index: {}]
  %s5 = inlined_call_operand.vmem [shape: f32[4,128], index: 5, kind: input, shape index: {}]
  %s6 = inlined_call_operand.vmem [shape: f32[2,128], index: 6, kind: input, shape index: {}]
  %s7 = inlined_call_operand.hbm [shape: f32[4,128], index: 7, kind: output, shape index: {0}]
  %s8 = inlined_call_operand.hbm [shape: f32[1,1], index: 8, kind: output, shape index: {1}]
  %9 = xla_tuple %s7, %s8
  %s10 = sld [smem:[#allocation0]]
  $region54: #{tpu_custom_call.1} parent=0
    _
  %s12 = ssub.s32 1, %s10
  %s13 = scalar_select 0, %s12, %s10
  %14 = sst [smem:[#allocation2]] %s1
  $region1: #{tpu_custom_call.1} parent=0
    #allocation3 [shape = 'u8[1024]{0}', space=smem, size = 0x400, scoped, tag = 'input window, operand 0, single buffered']
    #allocation4 [shape = 's32[1]{0}', space=sflag, size = 0x4, scoped, tag = 'scoped memory for tpu_custom_call.1']
    #allocation5 [shape = 's32[1]{0}', space=sflag, size = 0x4, scoped, tag = 'scoped memory for tpu_custom_call.1']
    #allocation6 [shape = 's32[1]{0}', space=sflag, size = 0x4, scoped, tag = 'scoped memory for tpu_custom_call.1']
    #allocation7 [shape = 'u8[2048]{0}', space=vmem, size = 0x800, scoped, tag = 'input window, operand 2, single buffered']
    #allocation8 [shape = 'u8[2048]{0}', space=vmem, size = 0x800, scoped, tag = 'output window, operand 0, single buffered']
    #allocation9 [shape = 'u8[512]{0}', space=vmem, size = 0x400, scoped, tag = 'output window, operand 1, single buffered']
    #allocation10 [shape = 's32[1]{0}', space=sflag, size = 0x4, scoped, tag = 'scoped memory for tpu_custom_call.1']
    %15 = vsyncpa [#allocation6], 0
    %16 = vsyncpa [#allocation4], 0
    %17 = vsyncpa [#allocation5], 0
    %18 = vsyncpa [#allocation10], 0
    // Predicated region
    $region2: #{tpu_custom_call.1} parent=1 // pred_check
      _
    $region3: #{tpu_custom_call.1} parent=1 // pred_check_branch
      %20 = sbr.rel (0) target = $region5
    $region4: #{tpu_custom_call.1} parent=1 // pred_region
      %s22 = ssub.s32 32, 32
      %23 = vsyncadd [#allocation6], %s22
      %26 = dma.hbm_to_smem %s0, 32, [#allocation3], [#allocation6]
    $region5: #{tpu_custom_call.1} parent=1 // pred_fallthru
      _
    // Predicated region
    $region6: #{tpu_custom_call.1} parent=1 // pred_check
      _
    $region7: #{tpu_custom_call.1} parent=1 // pred_check_branch
      %28 = sbr.rel (0) target = $region9
    $region8: #{tpu_custom_call.1} parent=1 // pred_region
      _
    $region9: #{tpu_custom_call.1} parent=1 // pred_fallthru
      _
    // Predicated region
    $region10: #{tpu_custom_call.1} parent=1 // pred_check
      _
    $region11: #{tpu_custom_call.1} parent=1 // pred_check_branch
      %30 = sbr.rel (0) target = $region13
    $region12: #{tpu_custom_call.1} parent=1 // pred_region
      %s32 = ssub.s32 64, 64
      %33 = vsyncadd [#allocation4], %s32
      %s35 = sshll.u32 [#allocation7], 4
      %s36 = int_to_ptr.vmem [resolvable:$true] %s35
      %38 = dma.hbm_to_vmem [thread:$0]  %s2, 64, %s36, [#allocation4]
    $region13: #{tpu_custom_call.1} parent=1 // pred_fallthru
      _
    // Predicated region
    $region14: #{tpu_custom_call.1} parent=1 // pred_check
      _
    $region15: #{tpu_custom_call.1} parent=1 // pred_check_branch
      %40 = sbr.rel (0) target = $region17
    $region16: #{tpu_custom_call.1} parent=1 // pred_region
      _
    $region17: #{tpu_custom_call.1} parent=1 // pred_fallthru
      _
    // Predicated region
    $region18: #{tpu_custom_call.1} parent=1 // pred_check
      _
    $region19: #{tpu_custom_call.1} parent=1 // pred_check_branch
      %42 = sbr.rel (0) target = $region21
    $region20: #{tpu_custom_call.1} parent=1 // pred_region
      _
    $region21: #{tpu_custom_call.1} parent=1 // pred_fallthru
      _
    // Predicated region
    $region22: #{tpu_custom_call.1} parent=1 // pred_check
      _
    $region23: #{tpu_custom_call.1} parent=1 // pred_check_branch
      %44 = sbr.rel (0) target = $region25
    $region24: #{tpu_custom_call.1} parent=1 // pred_region
      _
    $region25: #{tpu_custom_call.1} parent=1 // pred_fallthru
      _
    // Predicated region
    $region26: #{tpu_custom_call.1} parent=1 // pred_check
      _
    $region27: #{tpu_custom_call.1} parent=1 // pred_check_branch
      %46 = sbr.rel (0) target = $region29
    $region28: #{tpu_custom_call.1} parent=1 // pred_region
      _
    $region29: #{tpu_custom_call.1} parent=1 // pred_fallthru
      _
    // Predicated region
    $region30: #{tpu_custom_call.1} parent=1 // pred_check
      _
    $region31: #{tpu_custom_call.1} parent=1 // pred_check_branch
      %48 = sbr.rel (0) target = $region33
    $region32: #{tpu_custom_call.1} parent=1 // pred_region
      %49 = dma.done [#allocation6], 32
    $region33: #{tpu_custom_call.1} parent=1 // pred_fallthru
      _
    // Predicated region
    $region34: #{tpu_custom_call.1} parent=1 // pred_check
      _
    $region35: #{tpu_custom_call.1} parent=1 // pred_check_branch
      %51 = sbr.rel (0) target = $region37
    $region36: #{tpu_custom_call.1} parent=1 // pred_region
      %52 = dma.done [#allocation4], 64
    $region37: #{tpu_custom_call.1} parent=1 // pred_fallthru
      _
    %53 = sfence
    %v54 = vld [vmem:[%s4] sm:$0x1]
    %v55 = vld [vmem:[%s4 + $0x1] sm:$0x1]
    %v56 = vld [vmem:[%s4 + $0x2] sm:$0x1]
    %v57 = vld [vmem:[#allocation7] sm:$0x1]
    %v58 = vadd.f32 %v57, %v54
    %v59 = vld [vmem:[#allocation7 + $0x1] sm:$0x1]
    %v60 = vadd.f32 %v59, %v55
    %v61 = vld [vmem:[#allocation7 + $0x2] sm:$0x1]
    %v62 = vadd.f32 %v61, %v56
    %63 = vst [vmem:[#allocation8] sm:$0x1] %v58
    %64 = vst [vmem:[#allocation8 + $0x1] sm:$0x1] %v60
    %65 = vst [vmem:[#allocation8 + $0x2] sm:$0x1] %v62
    %v66 = vld [vmem:[%s3] sm:$0x1]
    %67 = vst [vmem:[#allocation8 + $0x3] sm:$0x1] %v66
    %s68 = sld [smem:[#allocation2]]
    %v69 = vmul.f32 %v54, %v54
    %v70 = vmul.f32 %v55, %v55
    %v71 = vadd.f32 %v69, %v70
    %v72 = vmul.f32 %v56, %v56
    %v73 = vadd.f32 %v71, %v72
    %v74 = vstv %s68
    %v75 = vmul.f32 %v74, %v73
    %s76 = sld [smem:[#allocation3]]
    %s77 = sld [smem:[#allocation3 + $0x1]]
    %s78 = sld [smem:[#allocation3 + $0x2]]
    %s79 = sld [smem:[#allocation3 + $0x3]]
    %s80 = sld [smem:[#allocation3 + $0x4]]
    %s81 = sld [smem:[#allocation3 + $0x5]]
    %s82 = sld [smem:[#allocation3 + $0x9]]
    %s83 = sld [smem:[#allocation3 + $0xa]]
    %s84 = sld [smem:[#allocation3 + $0xb]]
    %s85 = sld [smem:[#allocation3 + $0xc]]
    %s86 = sld [smem:[#allocation3 + $0xd]]
    %s87 = sld [smem:[#allocation3 + $0xe]]
    %s88 = sld [smem:[#allocation3 + $0xf]]
    %s89 = sld [smem:[#allocation3 + $0x10]]
    %s90 = sld [smem:[#allocation3 + $0x11]]
    %s91 = sld [smem:[#allocation3 + $0x12]]
    %s92 = sld [smem:[#allocation3 + $0x13]]
    %s93 = sld [smem:[#allocation3 + $0x14]]
    %s94 = sld [smem:[#allocation3 + $0x15]]
    %s95 = sld [smem:[#allocation3 + $0x16]]
    %s96 = sld [smem:[#allocation3 + $0x17]]
    %s97 = sld [smem:[#allocation3 + $0x18]]
    %s98 = sld [smem:[#allocation3 + $0x19]]
    %v99 = vstv %s82
    %v100 = vmul.f32 %v99, %v58
    %v101 = vstv %s83
    %v102 = vmul.f32 %v101, %v60
    %v103 = vadd.f32 %v100, %v102
    %v104 = vstv %s84
    %v105 = vmul.f32 %v104, %v62
    %v106 = vadd.f32 %v103, %v105
    %v107 = vstv %s91
    %v108 = vadd.f32 %v106, %v107
    %v109 = vstv %s85
    %v110 = vmul.f32 %v109, %v58
    %v111 = vstv %s86
    %v112 = vmul.f32 %v111, %v60
    %v113 = vadd.f32 %v110, %v112
    %v114 = vstv %s87
    %v115 = vmul.f32 %v114, %v62
    %v116 = vadd.f32 %v113, %v115
    %v117 = vstv %s92
    %v118 = vadd.f32 %v116, %v117
    %v119 = vstv %s88
    %v120 = vmul.f32 %v119, %v58
    %v121 = vstv %s89
    %v122 = vmul.f32 %v121, %v60
    %v123 = vadd.f32 %v120, %v122
    %v124 = vstv %s90
    %v125 = vmul.f32 %v124, %v62
    %v126 = vadd.f32 %v123, %v125
    %v127 = vstv %s93
    %v128 = vadd.f32 %v126, %v127
    %v129 = vrcp.pop %v128
    %v130 = vmul.f32 %v108, %v129
    %v131 = vmul.f32 %v118, %v129
    %v132 = vmul.f32 %v130, %v130
    %v133 = vmul.f32 %v131, %v131
    %v134 = vadd.f32 %v132, %v133
    %v135 = vstv %s94
    %v136 = vmul.f32 %v135, %v134
    %v137 = vadd.f32 %v136, 1.0
    %v138 = vstv %s95
    %v139 = vmul.f32 %v138, %v134
    %v140 = vmul.f32 %v139, %v134
    %v141 = vadd.f32 %v137, %v140
    %v142 = vstv %s98
    %v143 = vmul.f32 %v142, %v134
    %v144 = vmul.f32 %v143, %v134
    %v145 = vmul.f32 %v144, %v134
    %v146 = vadd.f32 %v141, %v145
    %v147 = vmul.f32 %v130, %v146
    %s148 = smul.f32 %s96, 2.0
    %v149 = vstv %s148
    %v150 = vmul.f32 %v149, %v130
    %v151 = vmul.f32 %v150, %v131
    %v152 = vadd.f32 %v147, %v151
    %v153 = vmul.f32 %v130, 2.0
    %v154 = vmul.f32 %v153, %v130
    %v155 = vadd.f32 %v134, %v154
    %v156 = vstv %s97
    %v157 = vmul.f32 %v156, %v155
    %v158 = vadd.f32 %v152, %v157
    %v159 = vmul.f32 %v131, %v146
    %s160 = smul.f32 %s97, 2.0
    %v161 = vstv %s160
    %v162 = vmul.f32 %v161, %v130
    %v163 = vmul.f32 %v162, %v131
    %v164 = vadd.f32 %v159, %v163
    %v165 = vmul.f32 %v131, 2.0
    %v166 = vmul.f32 %v165, %v131
    %v167 = vadd.f32 %v134, %v166
    %v168 = vstv %s96
    %v169 = vmul.f32 %v168, %v167
    %v170 = vadd.f32 %v164, %v169
    %v171 = vstv %s76
    %v172 = vmul.f32 %v171, %v158
    %v173 = vstv %s77
    %v174 = vmul.f32 %v173, %v170
    %v175 = vadd.f32 %v172, %v174
    %v176 = vstv %s78
    %v177 = vadd.f32 %v175, %v176
    %v178 = vstv %s79
    %v179 = vmul.f32 %v178, %v158
    %v180 = vstv %s80
    %v181 = vmul.f32 %v180, %v170
    %v182 = vadd.f32 %v179, %v181
    %v183 = vstv %s81
    %v184 = vadd.f32 %v182, %v183
    %v185 = vld [vmem:[%s5] sm:$0x1]
    %v186 = vsub.f32 %v177, %v185
    %v187 = vld [vmem:[%s5 + $0x1] sm:$0x1]
    %v188 = vsub.f32 %v184, %v187
    %v189 = vld [vmem:[%s6] sm:$0x1]
    %vm190 = vcmp.gt.f32.partialorder %v189, 0.0
    %v191 = vmul.f32 %v186, %v186
    %v192 = vmul.f32 %v188, %v188
    %v193 = vadd.f32 %v191, %v192
    %v194 = vsel %vm190, %v193, 0.0
    %v195 = vadd.f32 %v75, %v194
    %s196 = sld [smem:[#allocation3 + $0x80]]
    %s197 = sld [smem:[#allocation3 + $0x81]]
    %s198 = sld [smem:[#allocation3 + $0x82]]
    %s199 = sld [smem:[#allocation3 + $0x83]]
    %s200 = sld [smem:[#allocation3 + $0x84]]
    %s201 = sld [smem:[#allocation3 + $0x85]]
    %s202 = sld [smem:[#allocation3 + $0x89]]
    %s203 = sld [smem:[#allocation3 + $0x8a]]
    %s204 = sld [smem:[#allocation3 + $0x8b]]
    %s205 = sld [smem:[#allocation3 + $0x8c]]
    %s206 = sld [smem:[#allocation3 + $0x8d]]
    %s207 = sld [smem:[#allocation3 + $0x8e]]
    %s208 = sld [smem:[#allocation3 + $0x8f]]
    %s209 = sld [smem:[#allocation3 + $0x90]]
    %s210 = sld [smem:[#allocation3 + $0x91]]
    %s211 = sld [smem:[#allocation3 + $0x92]]
    %s212 = sld [smem:[#allocation3 + $0x93]]
    %s213 = sld [smem:[#allocation3 + $0x94]]
    %s214 = sld [smem:[#allocation3 + $0x95]]
    %s215 = sld [smem:[#allocation3 + $0x96]]
    %s216 = sld [smem:[#allocation3 + $0x97]]
    %s217 = sld [smem:[#allocation3 + $0x98]]
    %s218 = sld [smem:[#allocation3 + $0x99]]
    %v219 = vstv %s202
    %v220 = vmul.f32 %v219, %v58
    %v221 = vstv %s203
    %v222 = vmul.f32 %v221, %v60
    %v223 = vadd.f32 %v220, %v222
    %v224 = vstv %s204
    %v225 = vmul.f32 %v224, %v62
    %v226 = vadd.f32 %v223, %v225
    %v227 = vstv %s211
    %v228 = vadd.f32 %v226, %v227
    %v229 = vstv %s205
    %v230 = vmul.f32 %v229, %v58
    %v231 = vstv %s206
    %v232 = vmul.f32 %v231, %v60
    %v233 = vadd.f32 %v230, %v232
    %v234 = vstv %s207
    %v235 = vmul.f32 %v234, %v62
    %v236 = vadd.f32 %v233, %v235
    %v237 = vstv %s212
    %v238 = vadd.f32 %v236, %v237
    %v239 = vstv %s208
    %v240 = vmul.f32 %v239, %v58
    %v241 = vstv %s209
    %v242 = vmul.f32 %v241, %v60
    %v243 = vadd.f32 %v240, %v242
    %v244 = vstv %s210
    %v245 = vmul.f32 %v244, %v62
    %v246 = vadd.f32 %v243, %v245
    %v247 = vstv %s213
    %v248 = vadd.f32 %v246, %v247
    %v249 = vrcp.pop %v248
    %v250 = vmul.f32 %v228, %v249
    %v251 = vmul.f32 %v238, %v249
    %v252 = vmul.f32 %v250, %v250
    %v253 = vmul.f32 %v251, %v251
    %v254 = vadd.f32 %v252, %v253
    %v255 = vstv %s214
    %v256 = vmul.f32 %v255, %v254
    %v257 = vadd.f32 %v256, 1.0
    %v258 = vstv %s215
    %v259 = vmul.f32 %v258, %v254
    %v260 = vmul.f32 %v259, %v254
    %v261 = vadd.f32 %v257, %v260
    %v262 = vstv %s218
    %v263 = vmul.f32 %v262, %v254
    %v264 = vmul.f32 %v263, %v254
    %v265 = vmul.f32 %v264, %v254
    %v266 = vadd.f32 %v261, %v265
    %v267 = vmul.f32 %v250, %v266
    %s268 = smul.f32 %s216, 2.0
    %v269 = vstv %s268
    %v270 = vmul.f32 %v269, %v250
    %v271 = vmul.f32 %v270, %v251
    %v272 = vadd.f32 %v267, %v271
    %v273 = vmul.f32 %v250, 2.0
    %v274 = vmul.f32 %v273, %v250
    %v275 = vadd.f32 %v254, %v274
    %v276 = vstv %s217
    %v277 = vmul.f32 %v276, %v275
    %v278 = vadd.f32 %v272, %v277
    %v279 = vmul.f32 %v251, %v266
    %s280 = smul.f32 %s217, 2.0
    %v281 = vstv %s280
    %v282 = vmul.f32 %v281, %v250
    %v283 = vmul.f32 %v282, %v251
    %v284 = vadd.f32 %v279, %v283
    %v285 = vmul.f32 %v251, 2.0
    %v286 = vmul.f32 %v285, %v251
    %v287 = vadd.f32 %v254, %v286
    %v288 = vstv %s216
    %v289 = vmul.f32 %v288, %v287
    %v290 = vadd.f32 %v284, %v289
    %v291 = vstv %s196
    %v292 = vmul.f32 %v291, %v278
    %v293 = vstv %s197
    %v294 = vmul.f32 %v293, %v290
    %v295 = vadd.f32 %v292, %v294
    %v296 = vstv %s198
    %v297 = vadd.f32 %v295, %v296
    %v298 = vstv %s199
    %v299 = vmul.f32 %v298, %v278
    %v300 = vstv %s200
    %v301 = vmul.f32 %v300, %v290
    %v302 = vadd.f32 %v299, %v301
    %v303 = vstv %s201
    %v304 = vadd.f32 %v302, %v303
    %v305 = vld [vmem:[%s5 + $0x2] sm:$0x1]
    %v306 = vsub.f32 %v297, %v305
    %v307 = vld [vmem:[%s5 + $0x3] sm:$0x1]
    %v308 = vsub.f32 %v304, %v307
    %v309 = vld [vmem:[%s6 + $0x1] sm:$0x1]
    %vm310 = vcmp.gt.f32.partialorder %v309, 0.0
    %v311 = vmul.f32 %v306, %v306
    %v312 = vmul.f32 %v308, %v308
    %v313 = vadd.f32 %v311, %v312
    %v314 = vsel %vm310, %v313, 0.0
    %v315 = vadd.f32 %v195, %v314
    %vm316 = vcmask 1040384
    %v317 = vsel %vm316, %v315, 0.0
    %318 = vadd.xlane.f32.xlu0 %v317
    %v319 = vpop.xlane.xlu0 %318
    %v320 = vrot.slane %v319, 4
    %v321 = vadd.f32 %v319, %v320
    %v322 = vrot.slane %v321, 2
    %v323 = vadd.f32 %v321, %v322
    %v324 = vrot.slane %v323, 1
    %v325 = vadd.f32 %v323, %v324
    %s326 = vtos %v325
    %v327 = vstv %s326
    %v328 = vadd.f32 %v327, 0.0
    %vm329 = vcmask 0
    %330 = vst.msk [vmem:[#allocation9] sm:$0x1] %vm329, %v328
    // Predicated region
    $region38: #{tpu_custom_call.1} parent=1 // pred_check
      _
    $region39: #{tpu_custom_call.1} parent=1 // pred_check_branch
      %332 = sbr.rel (0) target = $region41
    $region40: #{tpu_custom_call.1} parent=1 // pred_region
      %s334 = ssub.s32 64, 64
      %335 = vsyncadd [#allocation5], %s334
      %s337 = sshll.u32 [#allocation8], 4
      %s338 = int_to_ptr.vmem [resolvable:$true] %s337
      %340 = dma.vmem_to_hbm [thread:$0]  %s338, 64, %s7, [#allocation5]
    $region41: #{tpu_custom_call.1} parent=1 // pred_fallthru
      _
    // Predicated region
    $region42: #{tpu_custom_call.1} parent=1 // pred_check
      _
    $region43: #{tpu_custom_call.1} parent=1 // pred_check_branch
      %342 = sbr.rel (0) target = $region45
    $region44: #{tpu_custom_call.1} parent=1 // pred_region
      %s344 = ssub.s32 16, 16
      %345 = vsyncadd [#allocation10], %s344
      %s347 = sshll.u32 [#allocation9], 4
      %s348 = int_to_ptr.vmem [resolvable:$true] %s347
      %350 = dma.vmem_to_hbm [thread:$0]  %s348, 16, %s8, [#allocation10]
    $region45: #{tpu_custom_call.1} parent=1 // pred_fallthru
      _
    // Predicated region
    $region46: #{tpu_custom_call.1} parent=1 // pred_check
      _
    $region47: #{tpu_custom_call.1} parent=1 // pred_check_branch
      %352 = sbr.rel (0) target = $region49
    $region48: #{tpu_custom_call.1} parent=1 // pred_region
      %353 = dma.done [#allocation5], 64
    $region49: #{tpu_custom_call.1} parent=1 // pred_fallthru
      _
    // Predicated region
    $region50: #{tpu_custom_call.1} parent=1 // pred_check
      _
    $region51: #{tpu_custom_call.1} parent=1 // pred_check_branch
      %355 = sbr.rel (0) target = $region53
    $region52: #{tpu_custom_call.1} parent=1 // pred_region
      %356 = dma.done [#allocation10], 16
    $region53: #{tpu_custom_call.1} parent=1 // pred_fallthru
      _
    %357 = vsyncpa [#allocation4], 1
    %358 = vsyncpa [#allocation5], 1
    %359 = vsyncpa [#allocation10], 1
    %360 = vsyncpa [#allocation6], 1

</llo_original>
